<compile_context>
chip_gen: v7x
topology: tpu7x:2x2x1
jax: 0.10.0
libtpu: 0.0.40
codegen_flags: <defaults>
</compile_context>

<pallas_src>
import functools

import jax
import jax.numpy as jnp
from jax.experimental import pallas as pl
from jax.experimental.pallas import tpu as pltpu


# ------------------------------ Pallas kernel -------------------------------
def _attention_kernel(x_ref, wqkv_ref, bqkv_ref, o_ref, attn_ref, *,
                      mm_dtype, approx_softmax):
    BB, S, D = x_ref.shape

    # Flatten the batch into the matmul M dimension (leading-dim merge: free).
    x2 = x_ref[...].reshape(BB * S, D).astype(mm_dtype)            # (BB*S, D)

    def proj(p):
        w = wqkv_ref[p].astype(mm_dtype)                           # (D, D) view
        y = jnp.dot(x2, w, preferred_element_type=jnp.float32)     # f32 acc
        y = y + bqkv_ref[p]                                        # (1, D) bcast
        return y.astype(mm_dtype).reshape(BB, S, D)

    q = proj(0)   # 1/sqrt(D) is already folded into the Q weights/bias
    k = proj(1)
    v = proj(2)

    # Scores: (BB, S, S) with f32 accumulation on the MXU (no K relayout).
    energy = jnp.einsum("bqd,bkd->bqk", q, k,
                        preferred_element_type=jnp.float32)

    # Numerically stable softmax, kept in f32 on the VPU/EUP.
    m = jnp.max(energy, axis=-1, keepdims=True)
    e = jnp.exp(energy - m)
    row_sum = jnp.sum(e, axis=-1, keepdims=True)
    if approx_softmax:
        attn = e * pl.reciprocal(row_sum, approx=True)   # EUP slot (co-issues)
    else:
        attn = e / row_sum                               # exact VPU divide

    out = jnp.einsum("bqk,bkd->bqd", attn.astype(mm_dtype), v,
                     preferred_element_type=jnp.float32)

    o_ref[...] = out.astype(o_ref.dtype)
    attn_ref[...] = attn.astype(attn_ref.dtype)


# ---------------------- hardware query / block sizing -----------------------
def _tpu_hw_info():
    """(physical VMEM bytes per TensorCore, #TensorCores per chip) with safe
    fallbacks if the query is unavailable."""
    vmem = None
    try:
        info = pltpu.get_tpu_info()
        vmem = getattr(info, "vmem_capacity_bytes", None)
    except Exception:
        vmem = None
    if not vmem:
        vmem = 64 * 1024 * 1024          # conservative (v7x per-TC)
    cores = 1
    try:
        kind = jax.devices()[0].device_kind.lower()
        if "v7" in kind:
            cores = 2                    # v7x: 2 TensorCores per chip
    except Exception:
        pass
    return int(vmem), cores


def _pick_batch_block(B, S, D, in_bytes, out_bytes, mm_bytes, budget_bytes):
    """Largest divisor of B whose double-buffered pipeline blocks plus
    in-kernel temporaries fit within budget_bytes."""
    def footprint(bb):
        blocks = 2 * bb * S * (D * in_bytes + D * out_bytes + S * out_bytes)
        blocks += 2 * (3 * D * D * 4 + 3 * D * 4)        # resident weights/bias
        tmp = 3 * bb * S * D * mm_bytes                  # q, k, v
        tmp += 3 * bb * S * S * 4                        # energy / exp / attn
        tmp += bb * S * D * 4                            # f32 output accumulator
        return blocks + tmp

    best = 1
    for bb in range(1, B + 1):
        if B % bb == 0 and footprint(bb) <= budget_bytes:
            best = bb
    return best


# --------------------------------- wrapper -----------------------------------
def self_attention(x, wq, bq, wk, bk, wv, bv, *,
                   mm_dtype=jnp.float32, approx_softmax=None, batch_block=None):
    """x: (B, S, D); wq/wk/wv: PyTorch-style (out, in) = (D, D); b*: (D,).

    mm_dtype=jnp.bfloat16 casts the MXU operands to bf16 (f32 accumulation,
    f32 softmax) — the throughput lever on v6e/v7x/v5e.  f32 (default) matches
    the PyTorch f32 module to ~1e-4.
    """
    B, S, D = x.shape
    if approx_softmax is None:
        approx_softmax = (jnp.dtype(mm_dtype) == jnp.dtype(jnp.bfloat16))

    # Pack the projections as (3, D, D) / (3, 1, D):  qkv[p] = x @ w[p] + b[p].
    # Fold the 1/sqrt(D) energy scale into the Q weights and bias (zero cost).
    scale = 1.0 / (D ** 0.5)
    wqkv = jnp.stack([wq.T * scale, wk.T, wv.T], axis=0).astype(jnp.float32)
    bqkv = jnp.stack([bq * scale, bk, bv], axis=0)[:, None, :].astype(jnp.float32)

    in_bytes = jnp.dtype(x.dtype).itemsize
    out_bytes = jnp.dtype(x.dtype).itemsize
    mm_bytes = jnp.dtype(mm_dtype).itemsize

    vmem_phys, n_cores = _tpu_hw_info()
    if batch_block is None:
        budget = int(0.45 * vmem_phys)    # headroom for compiler scratch/spill
        batch_block = _pick_batch_block(B, S, D, in_bytes, out_bytes,
                                        mm_bytes, budget)
        # Keep >= 2 grid steps only when there are 2 TensorCores to feed
        # (v7x megacore); on 1-TC chips (v5e/v6e) a split is pure overhead.
        if n_cores >= 2 and batch_block == B and B % 2 == 0:
            batch_block = B // 2
    assert B % batch_block == 0, "batch_block must divide the batch size"
    grid = (B // batch_block,)

    flops = B * (3 * 2 * S * D * D + 2 * 2 * S * S * D)
    bytes_accessed = (in_bytes * B * S * D + 4 * (3 * D * D + 3 * D)
                      + out_bytes * (B * S * D + B * S * S))
    cost = pl.CostEstimate(flops=flops, transcendentals=B * S * S,
                           bytes_accessed=bytes_accessed)

    kernel = functools.partial(_attention_kernel, mm_dtype=mm_dtype,
                               approx_softmax=approx_softmax)

    return pl.pallas_call(
        kernel,
        out_shape=(jax.ShapeDtypeStruct((B, S, D), x.dtype),
                   jax.ShapeDtypeStruct((B, S, S), x.dtype)),
        grid=grid,
        in_specs=[pl.BlockSpec((batch_block, S, D), lambda n: (n, 0, 0)),
                  pl.BlockSpec((3, D, D), lambda n: (0, 0, 0)),
                  pl.BlockSpec((3, 1, D), lambda n: (0, 0, 0))],
        out_specs=(pl.BlockSpec((batch_block, S, D), lambda n: (n, 0, 0)),
                   pl.BlockSpec((batch_block, S, S), lambda n: (n, 0, 0))),
        compiler_params=pltpu.CompilerParams(
            dimension_semantics=("parallel",),
            vmem_limit_bytes=min(int(0.9 * vmem_phys), 128 * 1024 * 1024)),
        cost_estimate=cost,
    )(x, wqkv, bqkv)


# ------------------------- pure-JAX reference (check) ------------------------
def ref_self_attention(x, wq, bq, wk, bk, wv, bv):
    D = x.shape[-1]
    q = x @ wq.T + bq
    k = x @ wk.T + bk
    v = x @ wv.T + bv
    energy = jnp.einsum("bqd,bkd->bqk", q, k) / jnp.sqrt(jnp.float32(D))
    attn = jax.nn.softmax(energy, axis=-1)
    out = jnp.einsum("bqk,bkd->bqd", attn, v)
    return out, attn


# ----------------------------------- main ------------------------------------
if __name__ == "__main__":
    B, S, D = 2, 8, 32
    key = jax.random.PRNGKey(0)
    kx, kq, kk, kv, kbq, kbk, kbv = jax.random.split(key, 7)

    x = jax.random.normal(kx, (B, S, D), jnp.float32)

    def init_linear(kw, kb):
        bound = 1.0 / (D ** 0.5)
        w = jax.random.uniform(kw, (D, D), jnp.float32, -bound, bound)
        b = jax.random.uniform(kb, (D,), jnp.float32, -bound, bound)
        return w, b

    wq, bq = init_linear(kq, kbq)
    wk, bk = init_linear(kk, kbk)
    wv, bv = init_linear(kv, kbv)

    ref_out, ref_attn = ref_self_attention(x, wq, bq, wk, bk, wv, bv)

    # Exact path: f32 MXU operands + exact divide (matches the PyTorch module).
    out, attn = jax.block_until_ready(
        self_attention(x, wq, bq, wk, bk, wv, bv))
    assert out.shape == (B, S, D) and attn.shape == (B, S, S)
    err_out = float(jnp.max(jnp.abs(out - ref_out)))
    err_attn = float(jnp.max(jnp.abs(attn - ref_attn)))
    assert err_out < 1e-4, f"f32 output max abs error {err_out}"
    assert err_attn < 1e-4, f"f32 attention max abs error {err_attn}"

    # Fast path: bf16 MXU operands (f32 accumulation / f32 softmax) + EUP
    # approx reciprocal — the throughput configuration for v5e/v6e/v7x.
    out_b, attn_b = jax.block_until_ready(
        self_attention(x, wq, bq, wk, bk, wv, bv, mm_dtype=jnp.bfloat16))
    err_out_b = float(jnp.max(jnp.abs(out_b - ref_out)))
    err_attn_b = float(jnp.max(jnp.abs(attn_b - ref_attn)))
    assert err_out_b < 5e-2, f"bf16 output max abs error {err_out_b}"
    assert err_attn_b < 5e-2, f"bf16 attention max abs error {err_attn_b}"

    print("KERNEL_OK")
</pallas_src>

<mosaic_0001>
module attributes {stable_mosaic.version = 11 : i64} {
  func.func @_attention_kernel(%arg0: i32, %arg1: memref<2x8x32xf32, #tpu.memory_space<vmem>>, %arg2: memref<3x32x32xf32, #tpu.memory_space<vmem>>, %arg3: memref<3x1x32xf32, #tpu.memory_space<vmem>>, %arg4: memref<2x8x32xf32, #tpu.memory_space<vmem>>, %arg5: memref<2x8x8xf32, #tpu.memory_space<vmem>>) attributes {dimension_semantics = [#tpu.dimension_semantics<parallel>], iteration_bounds = array<i64: 1>, scalar_prefetch = 0 : i64, scratch_operands = 0 : i64, tpu.core_type = #tpu.core_type<tc>, window_params = [{transform_indices = @transform_0, window_bounds = array<i64: 2, 8, 32>}, {pipeline_mode = #tpu.pipeline_mode<synchronous>, transform_indices = @transform_1, window_bounds = array<i64: 3, 32, 32>}, {pipeline_mode = #tpu.pipeline_mode<synchronous>, transform_indices = @transform_2, window_bounds = array<i64: 3, 1, 32>}, {transform_indices = @transform_3, window_bounds = array<i64: 2, 8, 32>}, {transform_indices = @transform_4, window_bounds = array<i64: 2, 8, 8>}]} {
    %c0 = arith.constant 0 : index
    %c0_0 = arith.constant 0 : index
    %c0_1 = arith.constant 0 : index
    %0 = vector.load %arg1[%c0, %c0_0, %c0_1] : memref<2x8x32xf32, #tpu.memory_space<vmem>>, vector<2x8x32xf32>
    %1 = vector.shape_cast %0 : vector<2x8x32xf32> to vector<16x32xf32>
    %c0_2 = arith.constant 0 : index
    %c0_3 = arith.constant 0 : index
    %c0_4 = arith.constant 0 : index
    %2 = vector.load %arg2[%c0_2, %c0_3, %c0_4] : memref<3x32x32xf32, #tpu.memory_space<vmem>>, vector<1x32x32xf32>
    %3 = vector.shape_cast %2 : vector<1x32x32xf32> to vector<32x32xf32>
    %cst = arith.constant dense<0.000000e+00> : vector<16x32xf32>
    %4 = tpu.matmul %1, %3, %cst {dimension_numbers = #tpu.dot_dimension_numbers<[1], [0], [0], [1], [0, 0, 1, 1], [], []>} : vector<16x32xf32>, vector<32x32xf32>, vector<16x32xf32> -> vector<16x32xf32>
    %c0_5 = arith.constant 0 : index
    %c0_6 = arith.constant 0 : index
    %c0_7 = arith.constant 0 : index
    %5 = vector.load %arg3[%c0_5, %c0_6, %c0_7] : memref<3x1x32xf32, #tpu.memory_space<vmem>>, vector<1x1x32xf32>
    %6 = vector.shape_cast %5 : vector<1x1x32xf32> to vector<1x32xf32>
    %7 = vector.broadcast %6 : vector<1x32xf32> to vector<16x32xf32>
    %8 = arith.addf %4, %7 : vector<16x32xf32>
    %9 = vector.shape_cast %8 : vector<16x32xf32> to vector<2x8x32xf32>
    %c1 = arith.constant 1 : index
    %c0_8 = arith.constant 0 : index
    %c0_9 = arith.constant 0 : index
    %10 = vector.load %arg2[%c1, %c0_8, %c0_9] : memref<3x32x32xf32, #tpu.memory_space<vmem>>, vector<1x32x32xf32>
    %11 = vector.shape_cast %10 : vector<1x32x32xf32> to vector<32x32xf32>
    %cst_10 = arith.constant dense<0.000000e+00> : vector<16x32xf32>
    %12 = tpu.matmul %1, %11, %cst_10 {dimension_numbers = #tpu.dot_dimension_numbers<[1], [0], [0], [1], [0, 0, 1, 1], [], []>} : vector<16x32xf32>, vector<32x32xf32>, vector<16x32xf32> -> vector<16x32xf32>
    %c1_11 = arith.constant 1 : index
    %c0_12 = arith.constant 0 : index
    %c0_13 = arith.constant 0 : index
    %13 = vector.load %arg3[%c1_11, %c0_12, %c0_13] : memref<3x1x32xf32, #tpu.memory_space<vmem>>, vector<1x1x32xf32>
    %14 = vector.shape_cast %13 : vector<1x1x32xf32> to vector<1x32xf32>
    %15 = vector.broadcast %14 : vector<1x32xf32> to vector<16x32xf32>
    %16 = arith.addf %12, %15 : vector<16x32xf32>
    %17 = vector.shape_cast %16 : vector<16x32xf32> to vector<2x8x32xf32>
    %c2 = arith.constant 2 : index
    %c0_14 = arith.constant 0 : index
    %c0_15 = arith.constant 0 : index
    %18 = vector.load %arg2[%c2, %c0_14, %c0_15] : memref<3x32x32xf32, #tpu.memory_space<vmem>>, vector<1x32x32xf32>
    %19 = vector.shape_cast %18 : vector<1x32x32xf32> to vector<32x32xf32>
    %cst_16 = arith.constant dense<0.000000e+00> : vector<16x32xf32>
    %20 = tpu.matmul %1, %19, %cst_16 {dimension_numbers = #tpu.dot_dimension_numbers<[1], [0], [0], [1], [0, 0, 1, 1], [], []>} : vector<16x32xf32>, vector<32x32xf32>, vector<16x32xf32> -> vector<16x32xf32>
    %c2_17 = arith.constant 2 : index
    %c0_18 = arith.constant 0 : index
    %c0_19 = arith.constant 0 : index
    %21 = vector.load %arg3[%c2_17, %c0_18, %c0_19] : memref<3x1x32xf32, #tpu.memory_space<vmem>>, vector<1x1x32xf32>
    %22 = vector.shape_cast %21 : vector<1x1x32xf32> to vector<1x32xf32>
    %23 = vector.broadcast %22 : vector<1x32xf32> to vector<16x32xf32>
    %24 = arith.addf %20, %23 : vector<16x32xf32>
    %25 = vector.shape_cast %24 : vector<16x32xf32> to vector<2x8x32xf32>
    "tpu.trace_start"() <{level = 10 : i32, message = "bqd,bkd->bqk"}> : () -> ()
    %cst_20 = arith.constant dense<0.000000e+00> : vector<2x8x8xf32>
    %26 = tpu.matmul %9, %17, %cst_20 {dimension_numbers = #tpu.dot_dimension_numbers<[2], [2], [1], [1], [0, 0, 0, 1, 1, 1], [0], [0]>} : vector<2x8x32xf32>, vector<2x8x32xf32>, vector<2x8x8xf32> -> vector<2x8x8xf32>
    "tpu.trace_stop"() : () -> ()
    %cst_21 = arith.constant dense<0xFF800000> : vector<2x8xf32>
    %27 = vector.multi_reduction <maximumf>, %26, %cst_21 [2] : vector<2x8x8xf32> to vector<2x8xf32>
    %28 = vector.shape_cast %27 : vector<2x8xf32> to vector<2x8x1xf32>
    %29 = vector.broadcast %28 : vector<2x8x1xf32> to vector<2x8x8xf32>
    %30 = arith.subf %26, %29 : vector<2x8x8xf32>
    %31 = math.exp %30 : vector<2x8x8xf32>
    %cst_22 = arith.constant dense<0.000000e+00> : vector<2x8xf32>
    %32 = vector.multi_reduction <add>, %31, %cst_22 [2] : vector<2x8x8xf32> to vector<2x8xf32>
    %33 = vector.shape_cast %32 : vector<2x8xf32> to vector<2x8x1xf32>
    %34 = vector.broadcast %33 : vector<2x8x1xf32> to vector<2x8x8xf32>
    %35 = arith.divf %31, %34 : vector<2x8x8xf32>
    "tpu.trace_start"() <{level = 10 : i32, message = "bqk,bkd->bqd"}> : () -> ()
    %cst_23 = arith.constant dense<0.000000e+00> : vector<2x8x32xf32>
    %36 = tpu.matmul %35, %25, %cst_23 {dimension_numbers = #tpu.dot_dimension_numbers<[2], [1], [1], [2], [0, 0, 0, 1, 1, 2], [0], [0]>} : vector<2x8x8xf32>, vector<2x8x32xf32>, vector<2x8x32xf32> -> vector<2x8x32xf32>
    "tpu.trace_stop"() : () -> ()
    %c0_24 = arith.constant 0 : index
    %c0_25 = arith.constant 0 : index
    %c0_26 = arith.constant 0 : index
    %37 = vector.load %arg4[%c0_24, %c0_25, %c0_26] : memref<2x8x32xf32, #tpu.memory_space<vmem>>, vector<2x8x32xf32>
    tpu.vector_store %arg4[%c0_24, %c0_25, %c0_26], %36 {strides = array<i32>} : memref<2x8x32xf32, #tpu.memory_space<vmem>>, vector<2x8x32xf32>,
    %c0_27 = arith.constant 0 : index
    %c0_28 = arith.constant 0 : index
    %c0_29 = arith.constant 0 : index
    %38 = vector.load %arg5[%c0_27, %c0_28, %c0_29] : memref<2x8x8xf32, #tpu.memory_space<vmem>>, vector<2x8x8xf32>
    tpu.vector_store %arg5[%c0_27, %c0_28, %c0_29], %35 {strides = array<i32>} : memref<2x8x8xf32, #tpu.memory_space<vmem>>, vector<2x8x8xf32>,
    return
  }
  func.func @transform_0(%arg0: i32) -> (i32, i32, i32) {
    %c0_i32 = arith.constant 0 : i32
    %c0_i32_0 = arith.constant 0 : i32
    %c0_i32_1 = arith.constant 0 : i32
    return %arg0, %c0_i32, %c0_i32_0 : i32, i32, i32
  }
  func.func @transform_1(%arg0: i32) -> (i32, i32, i32) {
    %c0_i32 = arith.constant 0 : i32
    %c0_i32_0 = arith.constant 0 : i32
    %c0_i32_1 = arith.constant 0 : i32
    %c0_i32_2 = arith.constant 0 : i32
    return %c0_i32, %c0_i32_0, %c0_i32_1 : i32, i32, i32
  }
  func.func @transform_2(%arg0: i32) -> (i32, i32, i32) {
    %c0_i32 = arith.constant 0 : i32
    %c0_i32_0 = arith.constant 0 : i32
    %c0_i32_1 = arith.constant 0 : i32
    %c0_i32_2 = arith.constant 0 : i32
    return %c0_i32, %c0_i32_0, %c0_i32_1 : i32, i32, i32
  }
  func.func @transform_3(%arg0: i32) -> (i32, i32, i32) {
    %c0_i32 = arith.constant 0 : i32
    %c0_i32_0 = arith.constant 0 : i32
    %c0_i32_1 = arith.constant 0 : i32
    return %arg0, %c0_i32, %c0_i32_0 : i32, i32, i32
  }
  func.func @transform_4(%arg0: i32) -> (i32, i32, i32) {
    %c0_i32 = arith.constant 0 : i32
    %c0_i32_0 = arith.constant 0 : i32
    %c0_i32_1 = arith.constant 0 : i32
    return %arg0, %c0_i32, %c0_i32_0 : i32, i32, i32
  }
}

</mosaic_0001>

<llo_original>
// kernel: tpu_custom_call.1
$region0: #{tpu_custom_call.1}
  #allocation0 [shape = 'u32[]', space=smem, size = 0x4, offset = 0x4, fixed_abs, tag = 'smem constant byte address 0x4 - core index']
  #allocation1 [shape = 'u32[144,128]{1,0:T(1,128)}', space=vmem, size = 0x12000, scoped, tag = 'internal scratch']
  %s0 = inlined_call_operand.hbm [shape: f32[2,8,32], index: 0, kind: input, shape index: {}]
  %s1 = inlined_call_operand.hbm [shape: f32[3,32,32], index: 1, kind: input, shape index: {}]
  %s2 = inlined_call_operand.vmem [shape: f32[3,1,32], index: 2, kind: input, shape index: {}]
  %s3 = inlined_call_operand.hbm [shape: f32[2,8,32], index: 3, kind: output, shape index: {0}]
  %s4 = inlined_call_operand.hbm [shape: f32[2,8,8], index: 4, kind: output, shape index: {1}]
  %5 = xla_tuple %s3, %s4
  %s6 = sld [smem:[#allocation0]]
  $region38: #{tpu_custom_call.1} parent=0
    _
  %s8 = ssub.s32 1, %s6
  %s9 = scalar_select 0, %s8, %s6
  $region1: #{tpu_custom_call.1} parent=0
    #allocation2 [shape = 'u8[8192]{0}', space=vmem, size = 0x2000, scoped, tag = 'input window, operand 0, single buffered']
    #allocation3 [shape = 's32[1]{0}', space=sflag, size = 0x4, scoped, tag = 'scoped memory for tpu_custom_call.1']
    #allocation4 [shape = 's32[1]{0}', space=sflag, size = 0x4, scoped, tag = 'scoped memory for tpu_custom_call.1']
    #allocation5 [shape = 'u8[49152]{0}', space=vmem, size = 0xc000, scoped, tag = 'input window, operand 1, single buffered']
    #allocation6 [shape = 's32[1]{0}', space=sflag, size = 0x4, scoped, tag = 'scoped memory for tpu_custom_call.1']
    #allocation7 [shape = 'u8[8192]{0}', space=vmem, size = 0x2000, scoped, tag = 'output window, operand 0, single buffered']
    #allocation8 [shape = 'u8[8192]{0}', space=vmem, size = 0x2000, scoped, tag = 'output window, operand 1, single buffered']
    #allocation9 [shape = 's32[1]{0}', space=sflag, size = 0x4, scoped, tag = 'scoped memory for tpu_custom_call.1']
    %10 = vsyncpa [#allocation3], 0
    %11 = vsyncpa [#allocation6], 0
    %12 = vsyncpa [#allocation4], 0
    %13 = vsyncpa [#allocation9], 0
    // Predicated region
    $region2: #{tpu_custom_call.1} parent=1 // pred_check
      _
    $region3: #{tpu_custom_call.1} parent=1 // pred_check_branch
      %15 = sbr.rel (0) target = $region5
    $region4: #{tpu_custom_call.1} parent=1 // pred_region
      %s17 = ssub.s32 256, 256
      %18 = vsyncadd [#allocation3], %s17
      %s19 = sshll.u32 [#allocation2], 4
      %s20 = int_to_ptr.vmem [resolvable:$true] %s19
      %25 = dma.hbm_to_vmem [thread:$0]  %s0, 256, %s20, [#allocation3], 128, 128, 8
    $region5: #{tpu_custom_call.1} parent=1 // pred_fallthru
      _
    // Predicated region
    $region6: #{tpu_custom_call.1} parent=1 // pred_check
      _
    $region7: #{tpu_custom_call.1} parent=1 // pred_check_branch
      %27 = sbr.rel (0) target = $region9
    $region8: #{tpu_custom_call.1} parent=1 // pred_region
      %s29 = ssub.s32 1536, 1536
      %30 = vsyncadd [#allocation6], %s29
      %s31 = sshll.u32 [#allocation5], 4
      %s32 = int_to_ptr.vmem [resolvable:$true] %s31
      %37 = dma.hbm_to_vmem [thread:$0]  %s1, 1536, %s32, [#allocation6], 128, 128, 8
    $region9: #{tpu_custom_call.1} parent=1 // pred_fallthru
      _
    // Predicated region
    $region10: #{tpu_custom_call.1} parent=1 // pred_check
      _
    $region11: #{tpu_custom_call.1} parent=1 // pred_check_branch
      %39 = sbr.rel (0) target = $region13
    $region12: #{tpu_custom_call.1} parent=1 // pred_region
      _
    $region13: #{tpu_custom_call.1} parent=1 // pred_fallthru
      _
    // Predicated region
    $region14: #{tpu_custom_call.1} parent=1 // pred_check
      _
    $region15: #{tpu_custom_call.1} parent=1 // pred_check_branch
      %41 = sbr.rel (0) target = $region17
    $region16: #{tpu_custom_call.1} parent=1 // pred_region
      %42 = dma.done [#allocation3], 256
    $region17: #{tpu_custom_call.1} parent=1 // pred_fallthru
      _
    // Predicated region
    $region18: #{tpu_custom_call.1} parent=1 // pred_check
      _
    $region19: #{tpu_custom_call.1} parent=1 // pred_check_branch
      %44 = sbr.rel (0) target = $region21
    $region20: #{tpu_custom_call.1} parent=1 // pred_region
      %45 = dma.done [#allocation6], 1536
    $region21: #{tpu_custom_call.1} parent=1 // pred_fallthru
      _
    %v46 = vld [vmem:[#allocation2] sm:$0xff]
    %v47 = vld [vmem:[#allocation2 + $0x8] sm:$0xff]
    %v48 = vld [vmem:[#allocation5] sm:$0xff]
    %v49 = vld [vmem:[#allocation5 + $0x8] sm:$0xff]
    %v50 = vld [vmem:[#allocation5 + $0x10] sm:$0xff]
    %v51 = vld [vmem:[#allocation5 + $0x18] sm:$0xff]
    %v52 = vld [vmem:[%s2] sm:$0x1]
    %v54 = vlaneseq
    %v55 = vshrl.u32 %v54, 7
    %v56 = vsub.s32 0, %v55
    %v57 = vrot.slane %v52, %v56
    %vm59 = vcmask 261120
    %v61 = vsel %vm59, %v46, 0
    %v64 = vsel %vm59, %v47, 0
    %66 = vmatprep.subr.mxu0 0.0
    %67 = vmatpush1.msra.mxu0 %v48
    %68 = vmatprep.subr.mxu0 0.0
    %69 = vmatpush1.msra.mxu0 %v49
    %70 = vmatprep.subr.mxu0 0.0
    %71 = vmatpush1.msra.mxu0 %v50
    %72 = vmatprep.subr.mxu0 0.0
    %73 = vmatpush1.msra.mxu0 %v51
    %74 = vmatprep.subr.mxu0 0.0
    %75 = vmatpush1.msra.mxu0 0.0
    %76 = vmatprep.subr.mxu0 0.0
    %77 = vmatpush1.msra.mxu0 0.0
    %78 = vmatprep.subr.mxu0 0.0
    %79 = vmatpush1.msra.mxu0 0.0
    %80 = vmatprep.subr.mxu0 0.0
    %81 = vmatpush1.msra.mxu0 0.0
    %82 = vmatprep.subr.mxu0 0.0
    %83 = vmatpush1.msra.mxu0 0.0
    %84 = vmatprep.subr.mxu0 0.0
    %85 = vmatpush1.msra.mxu0 0.0
    %86 = vmatprep.subr.mxu0 0.0
    %87 = vmatpush1.msra.mxu0 0.0
    %88 = vmatprep.subr.mxu0 0.0
    %89 = vmatpush1.msra.mxu0 0.0
    %90 = vmatprep.subr.mxu0 0.0
    %91 = vmatpush1.msra.mxu0 0.0
    %92 = vmatprep.subr.mxu0 0.0
    %93 = vmatpush1.msra.mxu0 0.0
    %94 = vmatprep.subr.mxu0 0.0
    %95 = vmatpush1.msra.mxu0 0.0
    %96 = vmatprep.subr.mxu0 0.0
    %97 = vmatpush1.msra.mxu0 0.0
    %98 = vmatprep.subr.mxu0 0.0
    %99 = vmatpush1.msra.mxu0 0.0
    %100 = vmatprep.subr.mxu0 0.0
    %101 = vmatpush1.msra.mxu0 0.0
    %102 = vmatprep.subr.mxu0 0.0
    %103 = vmatpush1.msra.mxu0 0.0
    %104 = vmatprep.subr.mxu0 0.0
    %105 = vmatpush1.msra.mxu0 0.0
    %106 = vmatprep.subr.mxu0 0.0
    %107 = vmatpush1.msra.mxu0 0.0
    %108 = vmatprep.subr.mxu0 0.0
    %109 = vmatpush1.msra.mxu0 0.0
    %110 = vmatprep.subr.mxu0 0.0
    %111 = vmatpush1.msra.mxu0 0.0
    %112 = vmatprep.subr.mxu0 0.0
    %113 = vmatpush1.msra.mxu0 0.0
    %114 = vmatprep.subr.mxu0 0.0
    %115 = vmatpush1.msra.mxu0 0.0
    %116 = vmatprep.subr.mxu0 0.0
    %117 = vmatpush1.msra.mxu0 0.0
    %118 = vmatprep.subr.mxu0 0.0
    %119 = vmatpush1.msra.mxu0 0.0
    %120 = vmatprep.subr.mxu0 0.0
    %121 = vmatpush1.msra.mxu0 0.0
    %122 = vmatprep.subr.mxu0 0.0
    %123 = vmatpush1.msra.mxu0 0.0
    %124 = vmatprep.subr.mxu0 0.0
    %125 = vmatpush1.msra.mxu0 0.0
    %126 = vmatprep.subr.mxu0 0.0
    %127 = vmatpush1.msra.mxu0 0.0
    %128 = vmatprep.subr.mxu0 0.0
    %129 = vmatpush1.msra.mxu0 0.0
    %130 = vmatprep.mubr.f32.mxu0 0.0
    %131 = vmatmul.mubr.f32.gmra.mrb[0].mxu0 %v61
    %v132 = vpop.f32.mrb[0].mxu0
    %v133 = vadd.f32 %v57, %v132
    %v134 = vpop.f32.mrb[0].mxu0
    %135 = vmatprep.mubr.f32.mxu0 0.0
    %136 = vmatmul.mubr.f32.gmra.mrb[0].mxu0 %v64
    %v137 = vpop.f32.mrb[0].mxu0
    %v138 = vadd.f32 %v57, %v137
    %v139 = vpop.f32.mrb[0].mxu0
    %140 = vdwg.mxu0
    %s141 = scalar_lea.vmem [#allocation5], 32
    %v142 = vld [vmem:[%s141] sm:$0xff]
    %v143 = vld [vmem:[%s141 + $0x8] sm:$0xff]
    %v144 = vld [vmem:[%s141 + $0x10] sm:$0xff]
    %v145 = vld [vmem:[%s141 + $0x18] sm:$0xff]
    %s146 = scalar_lea.vmem %s2, 1
    %v147 = vld [vmem:[%s146] sm:$0x1]
    %v149 = vlaneseq
    %v150 = vshrl.u32 %v149, 7
    %v151 = vsub.s32 0, %v150
    %v152 = vrot.slane %v147, %v151
    %154 = vmatprep.subr.mxu0 0.0
    %155 = vmatpush1.msra.mxu0 %v142
    %156 = vmatprep.subr.mxu0 0.0
    %157 = vmatpush1.msra.mxu0 %v143
    %158 = vmatprep.subr.mxu0 0.0
    %159 = vmatpush1.msra.mxu0 %v144
    %160 = vmatprep.subr.mxu0 0.0
    %161 = vmatpush1.msra.mxu0 %v145
    %162 = vmatprep.subr.mxu0 0.0
    %163 = vmatpush1.msra.mxu0 0.0
    %164 = vmatprep.subr.mxu0 0.0
    %165 = vmatpush1.msra.mxu0 0.0
    %166 = vmatprep.subr.mxu0 0.0
    %167 = vmatpush1.msra.mxu0 0.0
    %168 = vmatprep.subr.mxu0 0.0
    %169 = vmatpush1.msra.mxu0 0.0
    %170 = vmatprep.subr.mxu0 0.0
    %171 = vmatpush1.msra.mxu0 0.0
    %172 = vmatprep.subr.mxu0 0.0
    %173 = vmatpush1.msra.mxu0 0.0
    %174 = vmatprep.subr.mxu0 0.0
    %175 = vmatpush1.msra.mxu0 0.0
    %176 = vmatprep.subr.mxu0 0.0
    %177 = vmatpush1.msra.mxu0 0.0
    %178 = vmatprep.subr.mxu0 0.0
    %179 = vmatpush1.msra.mxu0 0.0
    %180 = vmatprep.subr.mxu0 0.0
    %181 = vmatpush1.msra.mxu0 0.0
    %182 = vmatprep.subr.mxu0 0.0
    %183 = vmatpush1.msra.mxu0 0.0
    %184 = vmatprep.subr.mxu0 0.0
    %185 = vmatpush1.msra.mxu0 0.0
    %186 = vmatprep.subr.mxu0 0.0
    %187 = vmatpush1.msra.mxu0 0.0
    %188 = vmatprep.subr.mxu0 0.0
    %189 = vmatpush1.msra.mxu0 0.0
    %190 = vmatprep.subr.mxu0 0.0
    %191 = vmatpush1.msra.mxu0 0.0
    %192 = vmatprep.subr.mxu0 0.0
    %193 = vmatpush1.msra.mxu0 0.0
    %194 = vmatprep.subr.mxu0 0.0
    %195 = vmatpush1.msra.mxu0 0.0
    %196 = vmatprep.subr.mxu0 0.0
    %197 = vmatpush1.msra.mxu0 0.0
    %198 = vmatprep.subr.mxu0 0.0
    %199 = vmatpush1.msra.mxu0 0.0
    %200 = vmatprep.subr.mxu0 0.0
    %201 = vmatpush1.msra.mxu0 0.0
    %202 = vmatprep.subr.mxu0 0.0
    %203 = vmatpush1.msra.mxu0 0.0
    %204 = vmatprep.subr.mxu0 0.0
    %205 = vmatpush1.msra.mxu0 0.0
    %206 = vmatprep.subr.mxu0 0.0
    %207 = vmatpush1.msra.mxu0 0.0
    %208 = vmatprep.subr.mxu0 0.0
    %209 = vmatpush1.msra.mxu0 0.0
    %210 = vmatprep.subr.mxu0 0.0
    %211 = vmatpush1.msra.mxu0 0.0
    %212 = vmatprep.subr.mxu0 0.0
    %213 = vmatpush1.msra.mxu0 0.0
    %214 = vmatprep.subr.mxu0 0.0
    %215 = vmatpush1.msra.mxu0 0.0
    %216 = vmatprep.subr.mxu0 0.0
    %217 = vmatpush1.msra.mxu0 0.0
    %218 = vmatprep.mubr.f32.mxu0 0.0
    %219 = vmatmul.mubr.f32.gmra.mrb[0].mxu0 %v61
    %v220 = vpop.f32.mrb[0].mxu0
    %v221 = vadd.f32 %v152, %v220
    %v222 = vpop.f32.mrb[0].mxu0
    %223 = vmatprep.mubr.f32.mxu0 0.0
    %224 = vmatmul.mubr.f32.gmra.mrb[0].mxu0 %v64
    %v225 = vpop.f32.mrb[0].mxu0
    %v226 = vadd.f32 %v152, %v225
    %v227 = vpop.f32.mrb[0].mxu0
    %228 = vdwg.mxu0
    %s229 = scalar_lea.vmem [#allocation5], 64
    %v230 = vld [vmem:[%s229] sm:$0xff]
    %v231 = vld [vmem:[%s229 + $0x8] sm:$0xff]
    %v232 = vld [vmem:[%s229 + $0x10] sm:$0xff]
    %v233 = vld [vmem:[%s229 + $0x18] sm:$0xff]
    %s234 = scalar_lea.vmem %s2, 2
    %v235 = vld [vmem:[%s234] sm:$0x1]
    %v237 = vlaneseq
    %v238 = vshrl.u32 %v237, 7
    %v239 = vsub.s32 0, %v238
    %v240 = vrot.slane %v235, %v239
    %242 = vmatprep.subr.mxu0 0.0
    %243 = vmatpush1.msra.mxu0 %v230
    %244 = vmatprep.subr.mxu0 0.0
    %245 = vmatpush1.msra.mxu0 %v231
    %246 = vmatprep.subr.mxu0 0.0
    %247 = vmatpush1.msra.mxu0 %v232
    %248 = vmatprep.subr.mxu0 0.0
    %249 = vmatpush1.msra.mxu0 %v233
    %250 = vmatprep.subr.mxu0 0.0
    %251 = vmatpush1.msra.mxu0 0.0
    %252 = vmatprep.subr.mxu0 0.0
    %253 = vmatpush1.msra.mxu0 0.0
    %254 = vmatprep.subr.mxu0 0.0
    %255 = vmatpush1.msra.mxu0 0.0
    %256 = vmatprep.subr.mxu0 0.0
    %257 = vmatpush1.msra.mxu0 0.0
    %258 = vmatprep.subr.mxu0 0.0
    %259 = vmatpush1.msra.mxu0 0.0
    %260 = vmatprep.subr.mxu0 0.0
    %261 = vmatpush1.msra.mxu0 0.0
    %262 = vmatprep.subr.mxu0 0.0
    %263 = vmatpush1.msra.mxu0 0.0
    %264 = vmatprep.subr.mxu0 0.0
    %265 = vmatpush1.msra.mxu0 0.0
    %266 = vmatprep.subr.mxu0 0.0
    %267 = vmatpush1.msra.mxu0 0.0
    %268 = vmatprep.subr.mxu0 0.0
    %269 = vmatpush1.msra.mxu0 0.0
    %270 = vmatprep.subr.mxu0 0.0
    %271 = vmatpush1.msra.mxu0 0.0
    %272 = vmatprep.subr.mxu0 0.0
    %273 = vmatpush1.msra.mxu0 0.0
    %274 = vmatprep.subr.mxu0 0.0
    %275 = vmatpush1.msra.mxu0 0.0
    %276 = vmatprep.subr.mxu0 0.0
    %277 = vmatpush1.msra.mxu0 0.0
    %278 = vmatprep.subr.mxu0 0.0
    %279 = vmatpush1.msra.mxu0 0.0
    %280 = vmatprep.subr.mxu0 0.0
    %281 = vmatpush1.msra.mxu0 0.0
    %282 = vmatprep.subr.mxu0 0.0
    %283 = vmatpush1.msra.mxu0 0.0
    %284 = vmatprep.subr.mxu0 0.0
    %285 = vmatpush1.msra.mxu0 0.0
    %286 = vmatprep.subr.mxu0 0.0
    %287 = vmatpush1.msra.mxu0 0.0
    %288 = vmatprep.subr.mxu0 0.0
    %289 = vmatpush1.msra.mxu0 0.0
    %290 = vmatprep.subr.mxu0 0.0
    %291 = vmatpush1.msra.mxu0 0.0
    %292 = vmatprep.subr.mxu0 0.0
    %293 = vmatpush1.msra.mxu0 0.0
    %294 = vmatprep.subr.mxu0 0.0
    %295 = vmatpush1.msra.mxu0 0.0
    %296 = vmatprep.subr.mxu0 0.0
    %297 = vmatpush1.msra.mxu0 0.0
    %298 = vmatprep.subr.mxu0 0.0
    %299 = vmatpush1.msra.mxu0 0.0
    %300 = vmatprep.subr.mxu0 0.0
    %301 = vmatpush1.msra.mxu0 0.0
    %302 = vmatprep.subr.mxu0 0.0
    %303 = vmatpush1.msra.mxu0 0.0
    %304 = vmatprep.subr.mxu0 0.0
    %305 = vmatpush1.msra.mxu0 0.0
    %306 = vmatprep.mubr.f32.mxu0 0.0
    %307 = vmatmul.mubr.f32.gmra.mrb[0].mxu0 %v61
    %v308 = vpop.f32.mrb[0].mxu0
    %v309 = vadd.f32 %v240, %v308
    %v310 = vpop.f32.mrb[0].mxu0
    %311 = vmatprep.mubr.f32.mxu0 0.0
    %312 = vmatmul.mubr.f32.gmra.mrb[0].mxu0 %v64
    %v313 = vpop.f32.mrb[0].mxu0
    %v314 = vadd.f32 %v240, %v313
    %v315 = vpop.f32.mrb[0].mxu0
    %316 = vdwg.mxu0
    %v318 = vsel %vm59, %v133, 0
    %v321 = vsel %vm59, %v221, 0
    %323 = vmatprep.subr.mxu0 0.0
    %324 = vmatpush1.xpose.msra.mxu0 %v321
    %325 = vmatprep.subr.mxu0 0.0
    %326 = vmatpush1.xpose.msra.mxu0 0.0
    %327 = vmatprep.subr.mxu0 0.0
    %328 = vmatpush1.xpose.msra.mxu0 0.0
    %329 = vmatprep.subr.mxu0 0.0
    %330 = vmatpush1.xpose.msra.mxu0 0.0
    %331 = vmatprep.subr.mxu0 0.0
    %332 = vmatpush1.xpose.msra.mxu0 0.0
    %333 = vmatprep.subr.mxu0 0.0
    %334 = vmatpush1.xpose.msra.mxu0 0.0
    %335 = vmatprep.subr.mxu0 0.0
    %336 = vmatpush1.xpose.msra.mxu0 0.0
    %337 = vmatprep.subr.mxu0 0.0
    %338 = vmatpush1.xpose.msra.mxu0 0.0
    %339 = vmatprep.subr.mxu0 0.0
    %340 = vmatpush1.xpose.msra.mxu0 0.0
    %341 = vmatprep.subr.mxu0 0.0
    %342 = vmatpush1.xpose.msra.mxu0 0.0
    %343 = vmatprep.subr.mxu0 0.0
    %344 = vmatpush1.xpose.msra.mxu0 0.0
    %345 = vmatprep.subr.mxu0 0.0
    %346 = vmatpush1.xpose.msra.mxu0 0.0
    %347 = vmatprep.subr.mxu0 0.0
    %348 = vmatpush1.xpose.msra.mxu0 0.0
    %349 = vmatprep.subr.mxu0 0.0
    %350 = vmatpush1.xpose.msra.mxu0 0.0
    %351 = vmatprep.subr.mxu0 0.0
    %352 = vmatpush1.xpose.msra.mxu0 0.0
    %353 = vmatprep.subr.mxu0 0.0
    %354 = vmatpush1.xpose.msra.mxu0 0.0
    %355 = vmatprep.subr.mxu0 0.0
    %356 = vmatpush1.xpose.msra.mxu0 0.0
    %357 = vmatprep.subr.mxu0 0.0
    %358 = vmatpush1.xpose.msra.mxu0 0.0
    %359 = vmatprep.subr.mxu0 0.0
    %360 = vmatpush1.xpose.msra.mxu0 0.0
    %361 = vmatprep.subr.mxu0 0.0
    %362 = vmatpush1.xpose.msra.mxu0 0.0
    %363 = vmatprep.subr.mxu0 0.0
    %364 = vmatpush1.xpose.msra.mxu0 0.0
    %365 = vmatprep.subr.mxu0 0.0
    %366 = vmatpush1.xpose.msra.mxu0 0.0
    %367 = vmatprep.subr.mxu0 0.0
    %368 = vmatpush1.xpose.msra.mxu0 0.0
    %369 = vmatprep.subr.mxu0 0.0
    %370 = vmatpush1.xpose.msra.mxu0 0.0
    %371 = vmatprep.subr.mxu0 0.0
    %372 = vmatpush1.xpose.msra.mxu0 0.0
    %373 = vmatprep.subr.mxu0 0.0
    %374 = vmatpush1.xpose.msra.mxu0 0.0
    %375 = vmatprep.subr.mxu0 0.0
    %376 = vmatpush1.xpose.msra.mxu0 0.0
    %377 = vmatprep.subr.mxu0 0.0
    %378 = vmatpush1.xpose.msra.mxu0 0.0
    %379 = vmatprep.subr.mxu0 0.0
    %380 = vmatpush1.xpose.msra.mxu0 0.0
    %381 = vmatprep.subr.mxu0 0.0
    %382 = vmatpush1.xpose.msra.mxu0 0.0
    %383 = vmatprep.subr.mxu0 0.0
    %384 = vmatpush1.xpose.msra.mxu0 0.0
    %385 = vmatprep.subr.mxu0 0.0
    %386 = vmatpush1.xpose.msra.mxu0 0.0
    %387 = vmatprep.mubr.f32.mxu0 0.0
    %388 = vmatmul.mubr.f32.gmra.mrb[0].mxu0 %v318
    %v389 = vpop.f32.mrb[0].mxu0
    %v390 = vadd.f32 0.0, %v389
    %v391 = vpop.f32.mrb[0].mxu0
    %392 = vdwg.mxu0
    %v394 = vsel %vm59, %v138, 0
    %v397 = vsel %vm59, %v226, 0
    %399 = vmatprep.subr.mxu0 0.0
    %400 = vmatpush1.xpose.msra.mxu0 %v397
    %401 = vmatprep.subr.mxu0 0.0
    %402 = vmatpush1.xpose.msra.mxu0 0.0
    %403 = vmatprep.subr.mxu0 0.0
    %404 = vmatpush1.xpose.msra.mxu0 0.0
    %405 = vmatprep.subr.mxu0 0.0
    %406 = vmatpush1.xpose.msra.mxu0 0.0
    %407 = vmatprep.subr.mxu0 0.0
    %408 = vmatpush1.xpose.msra.mxu0 0.0
    %409 = vmatprep.subr.mxu0 0.0
    %410 = vmatpush1.xpose.msra.mxu0 0.0
    %411 = vmatprep.subr.mxu0 0.0
    %412 = vmatpush1.xpose.msra.mxu0 0.0
    %413 = vmatprep.subr.mxu0 0.0
    %414 = vmatpush1.xpose.msra.mxu0 0.0
    %415 = vmatprep.subr.mxu0 0.0
    %416 = vmatpush1.xpose.msra.mxu0 0.0
    %417 = vmatprep.subr.mxu0 0.0
    %418 = vmatpush1.xpose.msra.mxu0 0.0
    %419 = vmatprep.subr.mxu0 0.0
    %420 = vmatpush1.xpose.msra.mxu0 0.0
    %421 = vmatprep.subr.mxu0 0.0
    %422 = vmatpush1.xpose.msra.mxu0 0.0
    %423 = vmatprep.subr.mxu0 0.0
    %424 = vmatpush1.xpose.msra.mxu0 0.0
    %425 = vmatprep.subr.mxu0 0.0
    %426 = vmatpush1.xpose.msra.mxu0 0.0
    %427 = vmatprep.subr.mxu0 0.0
    %428 = vmatpush1.xpose.msra.mxu0 0.0
    %429 = vmatprep.subr.mxu0 0.0
    %430 = vmatpush1.xpose.msra.mxu0 0.0
    %431 = vmatprep.subr.mxu0 0.0
    %432 = vmatpush1.xpose.msra.mxu0 0.0
    %433 = vmatprep.subr.mxu0 0.0
    %434 = vmatpush1.xpose.msra.mxu0 0.0
    %435 = vmatprep.subr.mxu0 0.0
    %436 = vmatpush1.xpose.msra.mxu0 0.0
    %437 = vmatprep.subr.mxu0 0.0
    %438 = vmatpush1.xpose.msra.mxu0 0.0
    %439 = vmatprep.subr.mxu0 0.0
    %440 = vmatpush1.xpose.msra.mxu0 0.0
    %441 = vmatprep.subr.mxu0 0.0
    %442 = vmatpush1.xpose.msra.mxu0 0.0
    %443 = vmatprep.subr.mxu0 0.0
    %444 = vmatpush1.xpose.msra.mxu0 0.0
    %445 = vmatprep.subr.mxu0 0.0
    %446 = vmatpush1.xpose.msra.mxu0 0.0
    %447 = vmatprep.subr.mxu0 0.0
    %448 = vmatpush1.xpose.msra.mxu0 0.0
    %449 = vmatprep.subr.mxu0 0.0
    %450 = vmatpush1.xpose.msra.mxu0 0.0
    %451 = vmatprep.subr.mxu0 0.0
    %452 = vmatpush1.xpose.msra.mxu0 0.0
    %453 = vmatprep.subr.mxu0 0.0
    %454 = vmatpush1.xpose.msra.mxu0 0.0
    %455 = vmatprep.subr.mxu0 0.0
    %456 = vmatpush1.xpose.msra.mxu0 0.0
    %457 = vmatprep.subr.mxu0 0.0
    %458 = vmatpush1.xpose.msra.mxu0 0.0
    %459 = vmatprep.subr.mxu0 0.0
    %460 = vmatpush1.xpose.msra.mxu0 0.0
    %461 = vmatprep.subr.mxu0 0.0
    %462 = vmatpush1.xpose.msra.mxu0 0.0
    %463 = vmatprep.mubr.f32.mxu0 0.0
    %464 = vmatmul.mubr.f32.gmra.mrb[0].mxu0 %v394
    %v465 = vpop.f32.mrb[0].mxu0
    %v466 = vadd.f32 0.0, %v465
    %v467 = vpop.f32.mrb[0].mxu0
    %468 = vdwg.mxu0
    %vm469 = vcmask 64512
    %v470 = vsel %vm469, %v390, -inf
    %471 = vmax.xlane.f32.xlu0 %v470
    %v472 = vpop.xlane.xlu0 %471
    %v473 = vsel %vm469, %v466, -inf
    %474 = vmax.xlane.f32.xlu0 %v473
    %v475 = vpop.xlane.xlu0 %474
    %v476 = vsub.f32 %v390, %v472
    %v477 = vsub.f32 %v466, %v475
    %v478 = vmul.f32 %v476, 1.442695
    %v479 = vpow.pop %v478
    %v480 = vmul.f32 %v477, 1.442695
    %v481 = vpow.pop %v480
    %v482 = vsel %vm469, %v479, 0.0
    %483 = vadd.xlane.f32.xlu0 %v482
    %v484 = vpop.xlane.xlu0 %483
    %v485 = vsel %vm469, %v481, 0.0
    %486 = vadd.xlane.f32.xlu0 %v485
    %v487 = vpop.xlane.xlu0 %486
    %v488 = vrcp.pop %v484
    %v489 = vmul.f32 %v479, %v488
    %v490 = vrcp.pop %v487
    %v491 = vmul.f32 %v481, %v490
    %v493 = vsel %vm469, %v489, 0
    %495 = vmatprep.subr.mxu0 0.0
    %496 = vmatpush1.msra.mxu0 %v309
    %497 = vmatprep.subr.mxu0 0.0
    %498 = vmatpush1.msra.mxu0 0.0
    %499 = vmatprep.subr.mxu0 0.0
    %500 = vmatpush1.msra.mxu0 0.0
    %501 = vmatprep.subr.mxu0 0.0
    %502 = vmatpush1.msra.mxu0 0.0
    %503 = vmatprep.subr.mxu0 0.0
    %504 = vmatpush1.msra.mxu0 0.0
    %505 = vmatprep.subr.mxu0 0.0
    %506 = vmatpush1.msra.mxu0 0.0
    %507 = vmatprep.subr.mxu0 0.0
    %508 = vmatpush1.msra.mxu0 0.0
    %509 = vmatprep.subr.mxu0 0.0
    %510 = vmatpush1.msra.mxu0 0.0
    %511 = vmatprep.subr.mxu0 0.0
    %512 = vmatpush1.msra.mxu0 0.0
    %513 = vmatprep.subr.mxu0 0.0
    %514 = vmatpush1.msra.mxu0 0.0
    %515 = vmatprep.subr.mxu0 0.0
    %516 = vmatpush1.msra.mxu0 0.0
    %517 = vmatprep.subr.mxu0 0.0
    %518 = vmatpush1.msra.mxu0 0.0
    %519 = vmatprep.subr.mxu0 0.0
    %520 = vmatpush1.msra.mxu0 0.0
    %521 = vmatprep.subr.mxu0 0.0
    %522 = vmatpush1.msra.mxu0 0.0
    %523 = vmatprep.subr.mxu0 0.0
    %524 = vmatpush1.msra.mxu0 0.0
    %525 = vmatprep.subr.mxu0 0.0
    %526 = vmatpush1.msra.mxu0 0.0
    %527 = vmatprep.subr.mxu0 0.0
    %528 = vmatpush1.msra.mxu0 0.0
    %529 = vmatprep.subr.mxu0 0.0
    %530 = vmatpush1.msra.mxu0 0.0
    %531 = vmatprep.subr.mxu0 0.0
    %532 = vmatpush1.msra.mxu0 0.0
    %533 = vmatprep.subr.mxu0 0.0
    %534 = vmatpush1.msra.mxu0 0.0
    %535 = vmatprep.subr.mxu0 0.0
    %536 = vmatpush1.msra.mxu0 0.0
    %537 = vmatprep.subr.mxu0 0.0
    %538 = vmatpush1.msra.mxu0 0.0
    %539 = vmatprep.subr.mxu0 0.0
    %540 = vmatpush1.msra.mxu0 0.0
    %541 = vmatprep.subr.mxu0 0.0
    %542 = vmatpush1.msra.mxu0 0.0
    %543 = vmatprep.subr.mxu0 0.0
    %544 = vmatpush1.msra.mxu0 0.0
    %545 = vmatprep.subr.mxu0 0.0
    %546 = vmatpush1.msra.mxu0 0.0
    %547 = vmatprep.subr.mxu0 0.0
    %548 = vmatpush1.msra.mxu0 0.0
    %549 = vmatprep.subr.mxu0 0.0
    %550 = vmatpush1.msra.mxu0 0.0
    %551 = vmatprep.subr.mxu0 0.0
    %552 = vmatpush1.msra.mxu0 0.0
    %553 = vmatprep.subr.mxu0 0.0
    %554 = vmatpush1.msra.mxu0 0.0
    %555 = vmatprep.subr.mxu0 0.0
    %556 = vmatpush1.msra.mxu0 0.0
    %557 = vmatprep.subr.mxu0 0.0
    %558 = vmatpush1.msra.mxu0 0.0
    %559 = vmatprep.mubr.f32.mxu0 0.0
    %560 = vmatmul.mubr.f32.gmra.mrb[0].mxu0 %v493
    %v561 = vpop.f32.mrb[0].mxu0
    %v562 = vadd.f32 0.0, %v561
    %v563 = vpop.f32.mrb[0].mxu0
    %564 = vdwg.mxu0
    %v566 = vsel %vm469, %v491, 0
    %568 = vmatprep.subr.mxu0 0.0
    %569 = vmatpush1.msra.mxu0 %v314
    %570 = vmatprep.subr.mxu0 0.0
    %571 = vmatpush1.msra.mxu0 0.0
    %572 = vmatprep.subr.mxu0 0.0
    %573 = vmatpush1.msra.mxu0 0.0
    %574 = vmatprep.subr.mxu0 0.0
    %575 = vmatpush1.msra.mxu0 0.0
    %576 = vmatprep.subr.mxu0 0.0
    %577 = vmatpush1.msra.mxu0 0.0
    %578 = vmatprep.subr.mxu0 0.0
    %579 = vmatpush1.msra.mxu0 0.0
    %580 = vmatprep.subr.mxu0 0.0
    %581 = vmatpush1.msra.mxu0 0.0
    %582 = vmatprep.subr.mxu0 0.0
    %583 = vmatpush1.msra.mxu0 0.0
    %584 = vmatprep.subr.mxu0 0.0
    %585 = vmatpush1.msra.mxu0 0.0
    %586 = vmatprep.subr.mxu0 0.0
    %587 = vmatpush1.msra.mxu0 0.0
    %588 = vmatprep.subr.mxu0 0.0
    %589 = vmatpush1.msra.mxu0 0.0
    %590 = vmatprep.subr.mxu0 0.0
    %591 = vmatpush1.msra.mxu0 0.0
    %592 = vmatprep.subr.mxu0 0.0
    %593 = vmatpush1.msra.mxu0 0.0
    %594 = vmatprep.subr.mxu0 0.0
    %595 = vmatpush1.msra.mxu0 0.0
    %596 = vmatprep.subr.mxu0 0.0
    %597 = vmatpush1.msra.mxu0 0.0
    %598 = vmatprep.subr.mxu0 0.0
    %599 = vmatpush1.msra.mxu0 0.0
    %600 = vmatprep.subr.mxu0 0.0
    %601 = vmatpush1.msra.mxu0 0.0
    %602 = vmatprep.subr.mxu0 0.0
    %603 = vmatpush1.msra.mxu0 0.0
    %604 = vmatprep.subr.mxu0 0.0
    %605 = vmatpush1.msra.mxu0 0.0
    %606 = vmatprep.subr.mxu0 0.0
    %607 = vmatpush1.msra.mxu0 0.0
    %608 = vmatprep.subr.mxu0 0.0
    %609 = vmatpush1.msra.mxu0 0.0
    %610 = vmatprep.subr.mxu0 0.0
    %611 = vmatpush1.msra.mxu0 0.0
    %612 = vmatprep.subr.mxu0 0.0
    %613 = vmatpush1.msra.mxu0 0.0
    %614 = vmatprep.subr.mxu0 0.0
    %615 = vmatpush1.msra.mxu0 0.0
    %616 = vmatprep.subr.mxu0 0.0
    %617 = vmatpush1.msra.mxu0 0.0
    %618 = vmatprep.subr.mxu0 0.0
    %619 = vmatpush1.msra.mxu0 0.0
    %620 = vmatprep.subr.mxu0 0.0
    %621 = vmatpush1.msra.mxu0 0.0
    %622 = vmatprep.subr.mxu0 0.0
    %623 = vmatpush1.msra.mxu0 0.0
    %624 = vmatprep.subr.mxu0 0.0
    %625 = vmatpush1.msra.mxu0 0.0
    %626 = vmatprep.subr.mxu0 0.0
    %627 = vmatpush1.msra.mxu0 0.0
    %628 = vmatprep.subr.mxu0 0.0
    %629 = vmatpush1.msra.mxu0 0.0
    %630 = vmatprep.subr.mxu0 0.0
    %631 = vmatpush1.msra.mxu0 0.0
    %632 = vmatprep.mubr.f32.mxu0 0.0
    %633 = vmatmul.mubr.f32.gmra.mrb[0].mxu0 %v566
    %v634 = vpop.f32.mrb[0].mxu0
    %v635 = vadd.f32 0.0, %v634
    %v636 = vpop.f32.mrb[0].mxu0
    %637 = vdwg.mxu0
    %638 = vst.msk [vmem:[#allocation7] sm:$0xff] %vm59, %v562
    %639 = vst.msk [vmem:[#allocation7 + $0x8] sm:$0xff] %vm59, %v635
    %640 = vst.msk [vmem:[#allocation8] sm:$0xff] %vm469, %v489
    %641 = vst.msk [vmem:[#allocation8 + $0x8] sm:$0xff] %vm469, %v491
    // Predicated region
    $region22: #{tpu_custom_call.1} parent=1 // pred_check
      _
    $region23: #{tpu_custom_call.1} parent=1 // pred_check_branch
      %643 = sbr.rel (0) target = $region25
    $region24: #{tpu_custom_call.1} parent=1 // pred_region
      %s645 = ssub.s32 256, 256
      %646 = vsyncadd [#allocation4], %s645
      %s647 = sshll.u32 [#allocation7], 4
      %s648 = int_to_ptr.vmem [resolvable:$true] %s647
      %653 = dma.vmem_to_hbm [thread:$0]  %s648, 256, %s3, [#allocation4], 128, 128, 8
    $region25: #{tpu_custom_call.1} parent=1 // pred_fallthru
      _
    // Predicated region
    $region26: #{tpu_custom_call.1} parent=1 // pred_check
      _
    $region27: #{tpu_custom_call.1} parent=1 // pred_check_branch
      %655 = sbr.rel (0) target = $region29
    $region28: #{tpu_custom_call.1} parent=1 // pred_region
      %s657 = ssub.s32 256, 256
      %658 = vsyncadd [#allocation9], %s657
      %s659 = sshll.u32 [#allocation8], 4
      %s660 = int_to_ptr.vmem [resolvable:$true] %s659
      %665 = dma.vmem_to_hbm [thread:$0]  %s660, 256, %s4, [#allocation9], 128, 128, 8
    $region29: #{tpu_custom_call.1} parent=1 // pred_fallthru
      _
    // Predicated region
    $region30: #{tpu_custom_call.1} parent=1 // pred_check
      _
    $region31: #{tpu_custom_call.1} parent=1 // pred_check_branch
      %667 = sbr.rel (0) target = $region33
    $region32: #{tpu_custom_call.1} parent=1 // pred_region
      %668 = dma.done [#allocation4], 256
    $region33: #{tpu_custom_call.1} parent=1 // pred_fallthru
      _
    // Predicated region
    $region34: #{tpu_custom_call.1} parent=1 // pred_check
      _
    $region35: #{tpu_custom_call.1} parent=1 // pred_check_branch
      %670 = sbr.rel (0) target = $region37
    $region36: #{tpu_custom_call.1} parent=1 // pred_region
      %671 = dma.done [#allocation9], 256
    $region37: #{tpu_custom_call.1} parent=1 // pred_fallthru
      _
    %672 = vsyncpa [#allocation3], 1
    %673 = vsyncpa [#allocation6], 1
    %674 = vsyncpa [#allocation4], 1
    %675 = vsyncpa [#allocation9], 1

</llo_original>
